<compile_context>
chip_gen: v7x
topology: tpu7x:2x2x1
jax: 0.10.0
libtpu: 0.0.40
codegen_flags: <defaults>
</compile_context>

<pallas_src>
import functools

import jax
import jax.numpy as jnp
from jax.experimental import pallas as pl
from jax.experimental.pallas import tpu as pltpu

GAMMA = 2.0
ALPHA = 0.25
SCORE_THR = 0.7
LOSS_WEIGHT = 1.0


def _is_v7x():
    """Best-effort generation check: only v7x has 2 TensorCores per chip."""
    try:
        kind = jax.devices()[0].device_kind.lower()
    except Exception:
        return False
    return "v7" in kind


def _round_up(x, m):
    return ((x + m - 1) // m) * m


def _faloss_kernel(pred_ref, onehot_ref, out_ref, *, gamma, alpha, score_thr):
    """One (TN, W) lane-dense tile of weighted sigmoid focal loss.

    pred_ref  : (TN, W) f32 logits, W = G*C lanes (G original rows packed side by side).
    onehot_ref: (TN, W) int8 one-hot of the GT column (0 for background / padding).
    out_ref   : (1, 1, W) f32 resident accumulator (block index constant over grid axis 1).
    """
    j = pl.program_id(1)  # reduction axis ("arbitrary")

    @pl.when(j == 0)
    def _():
        out_ref[...] = jnp.zeros_like(out_ref)

    x = pred_ref[...]                                  # (TN, W) f32 logits
    # int8 -> f32 convert then compare: bulletproof lowering, 2 VALU ops/elem instead of the
    # previous 2G-1 compare/or chain.
    t = onehot_ref[...].astype(jnp.float32)
    is_tgt = t > 0.5

    # Shared exp(-|x|): exact sigmoid AND the numerically stable BCE log term from a single
    # exponential (exp / divide / log1p on the EUP slot, which has headroom here).
    e = jnp.exp(-jnp.abs(x))
    r = 1.0 / (1.0 + e)                                # sigmoid(|x|)
    p = jnp.where(x >= 0.0, r, 1.0 - r)                # sigmoid(x)

    # Focal modulation; gamma == 2 fast path stays on the VPU (no pow -> no extra EUP).
    pt = jnp.where(is_tgt, 1.0 - p, p)
    mod = pt * pt if gamma == 2.0 else pt ** gamma
    focal_w = jnp.where(is_tgt, alpha, 1.0 - alpha) * mod

    # BCE with logits, exact stable form (matches the PyTorch reference):
    #   max(x, 0) - x*t + log(1 + exp(-|x|))
    bce = jnp.maximum(x, 0.0) - jnp.where(is_tgt, x, 0.0) + jnp.log1p(e)

    # High-score / GT-column weight mask folded into a single select.
    keep = jnp.logical_or(p >= score_thr, is_tgt)
    loss = jnp.where(keep, bce * focal_w, 0.0)

    # Sublane partial reduction straight into the tiny resident accumulator:
    # frees the vst slot (no per-vreg accumulator RMW) and shrinks the end-of-slice
    # writeback from ~MiB to W floats.
    out_ref[...] += jnp.sum(loss, axis=0, keepdims=True)[None, :, :]


def fa_loss(pred, target, *, gamma=GAMMA, alpha=ALPHA, score_thr=SCORE_THR,
            loss_weight=LOSS_WEIGHT, reduction="mean", avg_factor=None,
            max_block_rows=8192):
    """JAX/Pallas equivalent of FaLoss.forward (use_sigmoid=True, activated=False)."""
    n, c = pred.shape
    pred = pred.astype(jnp.float32)
    target = target.astype(jnp.int32)

    # ---- lane packing: make the slab's last dim a multiple of 128 lanes ----
    if c <= 128 and 128 % c == 0:
        g, c_pad = 128 // c, c              # pack G original rows side by side per slab row
    else:
        g, c_pad = 1, _round_up(c, 128)     # large-C regime: pad classes to 128-lane multiple
    w = g * c_pad

    # ---- lane-dense int8 one-hot of the GT column (built once in the wrapper) ----
    # target == c (background) or out-of-range -> all-zero row, as in F.one_hot(...)[:, :C].
    onehot = (target[:, None] == jnp.arange(c, dtype=jnp.int32)[None, :]).astype(jnp.int8)
    if c_pad != c:
        pred = jnp.pad(pred, ((0, 0), (0, c_pad - c)), constant_values=-100.0)
        onehot = jnp.pad(onehot, ((0, 0), (0, c_pad - c)))

    # ---- adaptive tiling ----
    # tn is a multiple of 32 (native int8 tiling), padding bounded (<= ~32*p_par*inner rows),
    # per-block pred bytes capped to stay inside v5e's 16 MiB scoped VMEM default (bigger on
    # v7x to amortize per-step overhead against its 3.2 TB/s HBM).
    r0 = -(-n // g)                                            # slab rows actually needed
    p_par = 2 if (_is_v7x() and r0 >= 64) else 1               # 2 TCs only on v7x
    bytes_cap = (4 << 20) if _is_v7x() else (1 << 20)
    tn_cap = min(max_block_rows, max(32, (bytes_cap // (w * 4)) // 32 * 32))
    inner = max(1, -(-r0 // (p_par * tn_cap)))                 # reduction blocks per slice
    tn = _round_up(-(-r0 // (p_par * inner)), 32)
    r = p_par * inner * tn
    n_pad = r * g

    # ---- row padding only when needed; fast path is a free row-major reshape (no copy) ----
    # Padded rows: logit -100 (sigmoid ~ 0 < score_thr) + zero one-hot -> exactly zero loss.
    # NOTE: this relies on score_thr > sigmoid(-100), true for any score_thr in (0, 1).
    if n_pad != n:
        pred = jnp.pad(pred, ((0, n_pad - n), (0, 0)), constant_values=-100.0)
        onehot = jnp.pad(onehot, ((0, n_pad - n), (0, 0)))
    pred_slab = pred.reshape(r, w)
    onehot_slab = onehot.reshape(r, w)

    kernel = functools.partial(_faloss_kernel, gamma=gamma, alpha=alpha,
                               score_thr=score_thr)

    # TODO(synk): if xprof shows exposed DMA on v7x, sweep pipeline_mode=pl.Buffered(3) on the
    # pred in_spec and/or verify both TCs engage (else switch leading axis to CORE_PARALLEL).
    partial = pl.pallas_call(
        kernel,
        out_shape=jax.ShapeDtypeStruct((p_par, 1, w), jnp.float32),
        grid_spec=pltpu.PrefetchScalarGridSpec(
            num_scalar_prefetch=0,
            grid=(p_par, inner),
            in_specs=[
                pl.BlockSpec((tn, w), lambda i, j: (i * inner + j, 0)),
                pl.BlockSpec((tn, w), lambda i, j: (i * inner + j, 0)),
            ],
            out_specs=pl.BlockSpec((1, 1, w), lambda i, j: (i, 0, 0)),
        ),
        compiler_params=pltpu.CompilerParams(
            dimension_semantics=("parallel", "arbitrary"),
            vmem_limit_bytes=32 * 1024 * 1024,
        ),
    )(pred_slab, onehot_slab)

    loss_sum = jnp.sum(partial)                 # (p_par, 1, W) -> scalar, trivially small

    if reduction == "mean":
        denom = (n * c) if avg_factor is None else avg_factor
        loss = loss_sum / denom
    elif reduction == "sum":
        loss = loss_sum
    else:
        # TODO(synk): reduction='none' needs a per-element (N, C) output; not implemented here.
        raise NotImplementedError("reduction='none' is not supported by this kernel")
    return loss_weight * loss


def _fa_loss_ref(pred, target, *, gamma=GAMMA, alpha=ALPHA, score_thr=SCORE_THR,
                 loss_weight=LOSS_WEIGHT):
    """Pure-JAX reference mirroring the PyTorch forward (foreground-only targets)."""
    n, c = pred.shape
    t = jax.nn.one_hot(target, c + 1, dtype=jnp.float32)[:, :c]
    x = pred.astype(jnp.float32)
    p = jax.nn.sigmoid(x)
    wm = jnp.maximum((p >= score_thr).astype(jnp.float32), t)
    pt = (1.0 - p) * t + p * (1.0 - t)
    fw = (alpha * t + (1.0 - alpha) * (1.0 - t)) * pt ** gamma
    bce = jnp.maximum(x, 0.0) - x * t + jnp.log1p(jnp.exp(-jnp.abs(x)))
    return loss_weight * jnp.mean(bce * fw * wm)


if __name__ == "__main__":
    key = jax.random.PRNGKey(0)
    N, C = 64, 16
    k_pred, k_tgt = jax.random.split(key)
    pred = jax.random.normal(k_pred, (N, C), dtype=jnp.float32) * 2.0
    # foreground labels only (the 1230-background branch is LVIS-specific; see TODO above)
    target = jax.random.randint(k_tgt, (N,), 0, C, dtype=jnp.int32)

    out = fa_loss(pred, target)
    out = jax.block_until_ready(out)

    ref = _fa_loss_ref(pred, target)
    assert jnp.allclose(out, ref, rtol=1e-5, atol=1e-6), (float(out), float(ref))

    print("KERNEL_OK")
</pallas_src>

<mosaic_0001>
module attributes {stable_mosaic.version = 11 : i64} {
  func.func @_faloss_kernel(%arg0: i32, %arg1: i32, %arg2: memref<32x128xf32, #tpu.memory_space<vmem>>, %arg3: memref<32x128xi8, #tpu.memory_space<vmem>>, %arg4: memref<1x1x128xf32, #tpu.memory_space<vmem>>) attributes {dimension_semantics = [#tpu.dimension_semantics<parallel>, #tpu.dimension_semantics<arbitrary>], iteration_bounds = array<i64: 1, 1>, scalar_prefetch = 0 : i64, scratch_operands = 0 : i64, tpu.core_type = #tpu.core_type<tc>, window_params = [{transform_indices = @transform_0, window_bounds = array<i64: 32, 128>}, {transform_indices = @transform_1, window_bounds = array<i64: 32, 128>}, {transform_indices = @transform_2, window_bounds = array<i64: 1, 1, 128>}]} {
    %c0_i32 = arith.constant 0 : i32
    %0 = arith.cmpi eq, %arg1, %c0_i32 : i32
    %1 = arith.extui %0 : i1 to i32
    %c0_i32_0 = arith.constant 0 : i32
    %2 = arith.cmpi ne, %1, %c0_i32_0 : i32
    scf.if %2 {
      %cst_23 = arith.constant 0.000000e+00 : f32
      %48 = vector.broadcast %cst_23 : f32 to vector<1x1x128xf32>
      %c0_24 = arith.constant 0 : index
      %c0_25 = arith.constant 0 : index
      %c0_26 = arith.constant 0 : index
      %49 = vector.load %arg4[%c0_24, %c0_25, %c0_26] : memref<1x1x128xf32, #tpu.memory_space<vmem>>, vector<1x1x128xf32>
      tpu.vector_store %arg4[%c0_24, %c0_25, %c0_26], %48 {strides = array<i32>} : memref<1x1x128xf32, #tpu.memory_space<vmem>>, vector<1x1x128xf32>,
    } else {
    }
    %c0 = arith.constant 0 : index
    %c0_1 = arith.constant 0 : index
    %3 = vector.load %arg2[%c0, %c0_1] : memref<32x128xf32, #tpu.memory_space<vmem>>, vector<32x128xf32>
    %c0_2 = arith.constant 0 : index
    %c0_3 = arith.constant 0 : index
    %4 = vector.load %arg3[%c0_2, %c0_3] : memref<32x128xi8, #tpu.memory_space<vmem>>, vector<32x128xi8>
    %5 = arith.sitofp %4 : vector<32x128xi8> to vector<32x128xf32>
    %cst = arith.constant 5.000000e-01 : f32
    %6 = vector.broadcast %cst : f32 to vector<32x128xf32>
    %7 = arith.cmpf ogt, %5, %6 : vector<32x128xf32>
    %8 = math.absf %3 : vector<32x128xf32>
    %cst_4 = arith.constant 0.000000e+00 : f32
    %9 = vector.broadcast %cst_4 : f32 to vector<32x128xf32>
    %10 = arith.subf %9, %8 : vector<32x128xf32>
    %11 = math.exp %10 : vector<32x128xf32>
    %cst_5 = arith.constant 1.000000e+00 : f32
    %12 = vector.broadcast %cst_5 : f32 to vector<32x128xf32>
    %13 = arith.addf %12, %11 : vector<32x128xf32>
    %cst_6 = arith.constant 1.000000e+00 : f32
    %14 = vector.broadcast %cst_6 : f32 to vector<32x128xf32>
    %15 = arith.divf %14, %13 : vector<32x128xf32>
    %cst_7 = arith.constant 0.000000e+00 : f32
    %16 = vector.broadcast %cst_7 : f32 to vector<32x128xf32>
    %17 = arith.cmpf oge, %3, %16 : vector<32x128xf32>
    %cst_8 = arith.constant 1.000000e+00 : f32
    %18 = vector.broadcast %cst_8 : f32 to vector<32x128xf32>
    %19 = arith.subf %18, %15 : vector<32x128xf32>
    %20 = arith.select %17, %15, %19 : vector<32x128xi1>, vector<32x128xf32>
    %cst_9 = arith.constant 1.000000e+00 : f32
    %21 = vector.broadcast %cst_9 : f32 to vector<32x128xf32>
    %22 = arith.subf %21, %20 : vector<32x128xf32>
    %23 = arith.select %7, %22, %20 : vector<32x128xi1>, vector<32x128xf32>
    %24 = arith.mulf %23, %23 : vector<32x128xf32>
    %cst_10 = arith.constant 2.500000e-01 : f32
    %cst_11 = arith.constant 7.500000e-01 : f32
    %25 = vector.broadcast %cst_10 : f32 to vector<32x128xf32>
    %26 = vector.broadcast %cst_11 : f32 to vector<32x128xf32>
    %27 = arith.select %7, %25, %26 : vector<32x128xi1>, vector<32x128xf32>
    %28 = arith.mulf %27, %24 : vector<32x128xf32>
    %cst_12 = arith.constant 0.000000e+00 : f32
    %29 = vector.broadcast %cst_12 : f32 to vector<32x128xf32>
    %30 = arith.maximumf %3, %29 : vector<32x128xf32>
    %cst_13 = arith.constant 0.000000e+00 : f32
    %31 = vector.broadcast %cst_13 : f32 to vector<32x128xf32>
    %32 = arith.select %7, %3, %31 : vector<32x128xi1>, vector<32x128xf32>
    %33 = arith.subf %30, %32 : vector<32x128xf32>
    %34 = math.log1p %11 : vector<32x128xf32>
    %35 = arith.addf %33, %34 : vector<32x128xf32>
    %cst_14 = arith.constant 0.699999988 : f32
    %36 = vector.broadcast %cst_14 : f32 to vector<32x128xf32>
    %37 = arith.cmpf oge, %20, %36 : vector<32x128xf32>
    %38 = arith.ori %37, %7 : vector<32x128xi1>
    %39 = arith.mulf %35, %28 : vector<32x128xf32>
    %cst_15 = arith.constant 0.000000e+00 : f32
    %40 = vector.broadcast %cst_15 : f32 to vector<32x128xf32>
    %41 = arith.select %38, %39, %40 : vector<32x128xi1>, vector<32x128xf32>
    %c0_16 = arith.constant 0 : index
    %c0_17 = arith.constant 0 : index
    %c0_18 = arith.constant 0 : index
    %42 = vector.load %arg4[%c0_16, %c0_17, %c0_18] : memref<1x1x128xf32, #tpu.memory_space<vmem>>, vector<1x1x128xf32>
    %cst_19 = arith.constant dense<0.000000e+00> : vector<128xf32>
    %43 = vector.multi_reduction <add>, %41, %cst_19 [0] : vector<32x128xf32> to vector<128xf32>
    %44 = vector.shape_cast %43 : vector<128xf32> to vector<1x128xf32>
    %45 = vector.shape_cast %44 : vector<1x128xf32> to vector<1x1x128xf32>
    %46 = arith.addf %42, %45 : vector<1x1x128xf32>
    %c0_20 = arith.constant 0 : index
    %c0_21 = arith.constant 0 : index
    %c0_22 = arith.constant 0 : index
    %47 = vector.load %arg4[%c0_20, %c0_21, %c0_22] : memref<1x1x128xf32, #tpu.memory_space<vmem>>, vector<1x1x128xf32>
    tpu.vector_store %arg4[%c0_20, %c0_21, %c0_22], %46 {strides = array<i32>} : memref<1x1x128xf32, #tpu.memory_space<vmem>>, vector<1x1x128xf32>,
    return
  }
  func.func @transform_0(%arg0: i32, %arg1: i32) -> (i32, i32) {
    %c1_i32 = arith.constant 1 : i32
    %0 = arith.muli %arg0, %c1_i32 : i32
    %1 = arith.addi %0, %arg1 : i32
    %c0_i32 = arith.constant 0 : i32
    %c0_i32_0 = arith.constant 0 : i32
    return %1, %c0_i32 : i32, i32
  }
  func.func @transform_1(%arg0: i32, %arg1: i32) -> (i32, i32) {
    %c1_i32 = arith.constant 1 : i32
    %0 = arith.muli %arg0, %c1_i32 : i32
    %1 = arith.addi %0, %arg1 : i32
    %c0_i32 = arith.constant 0 : i32
    %c0_i32_0 = arith.constant 0 : i32
    return %1, %c0_i32 : i32, i32
  }
  func.func @transform_2(%arg0: i32, %arg1: i32) -> (i32, i32, i32) {
    %c0_i32 = arith.constant 0 : i32
    %c0_i32_0 = arith.constant 0 : i32
    %c0_i32_1 = arith.constant 0 : i32
    return %arg0, %c0_i32, %c0_i32_0 : i32, i32, i32
  }
}

</mosaic_0001>

<llo_original>
// kernel: tpu_custom_call.1
$region0: #{tpu_custom_call.1}
  #allocation0 [shape = 'u32[]', space=smem, size = 0x4, offset = 0x4, fixed_abs, tag = 'smem constant byte address 0x4 - core index']
  #allocation1 [shape = 'u32[144,128]{1,0:T(1,128)}', space=vmem, size = 0x12000, scoped, tag = 'internal scratch']
  %s0 = inlined_call_operand.hbm [shape: f32[32,128], index: 0, kind: input, shape index: {}]
  %s1 = inlined_call_operand.hbm [shape: s8[32,128], index: 1, kind: input, shape index: {}]
  %s2 = inlined_call_operand.hbm [shape: f32[1,1,128], index: 2, kind: output, shape index: {}]
  %s3 = sld [smem:[#allocation0]]
  $region30: #{tpu_custom_call.1} parent=0
    _
  %s5 = ssub.s32 1, %s3
  %s6 = scalar_select 0, %s5, %s3
  $region1: #{tpu_custom_call.1} parent=0
    #allocation2 [shape = 'u8[16384]{0}', space=vmem, size = 0x4000, scoped, tag = 'input window, operand 0, single buffered']
    #allocation3 [shape = 's32[1]{0}', space=sflag, size = 0x4, scoped, tag = 'scoped memory for tpu_custom_call.1']
    #allocation4 [shape = 's32[1]{0}', space=sflag, size = 0x4, scoped, tag = 'scoped memory for tpu_custom_call.1']
    #allocation5 [shape = 'u8[4096]{0}', space=vmem, size = 0x1000, scoped, tag = 'input window, operand 1, single buffered']
    #allocation6 [shape = 's32[1]{0}', space=sflag, size = 0x4, scoped, tag = 'scoped memory for tpu_custom_call.1']
    #allocation7 [shape = 'u8[512]{0}', space=vmem, size = 0x400, scoped, tag = 'output window, operand 0, single buffered']
    %7 = vsyncpa [#allocation3], 0
    %8 = vsyncpa [#allocation6], 0
    %9 = vsyncpa [#allocation4], 0
    // Predicated region
    $region2: #{tpu_custom_call.1} parent=1 // pred_check
      _
    $region3: #{tpu_custom_call.1} parent=1 // pred_check_branch
      %11 = sbr.rel (0) target = $region5
    $region4: #{tpu_custom_call.1} parent=1 // pred_region
      %s12 = sadd.s32 0, 0
      %s13 = smul.u32 4, %s12
      %s15 = ssub.s32 512, 512
      %16 = vsyncadd [#allocation3], %s15
      %s17 = smul.addr %s13, 128
      %s18 = scalar_lea.hbm %s0, %s17
      %s19 = sshll.u32 [#allocation2], 4
      %s20 = int_to_ptr.vmem [resolvable:$true] %s19
      %25 = dma.hbm_to_vmem [thread:$0]  %s18, 512, %s20, [#allocation3], 128, 128, 8
    $region5: #{tpu_custom_call.1} parent=1 // pred_fallthru
      _
    // Predicated region
    $region6: #{tpu_custom_call.1} parent=1 // pred_check
      _
    $region7: #{tpu_custom_call.1} parent=1 // pred_check_branch
      %27 = sbr.rel (0) target = $region9
    $region8: #{tpu_custom_call.1} parent=1 // pred_region
      %s28 = sadd.s32 0, 0
      %s30 = ssub.s32 128, 128
      %31 = vsyncadd [#allocation6], %s30
      %s32 = smul.addr %s28, 128
      %s33 = scalar_lea.hbm %s1, %s32
      %s35 = sshll.u32 [#allocation5], 4
      %s36 = int_to_ptr.vmem [resolvable:$true] %s35
      %38 = dma.hbm_to_vmem [thread:$0]  %s33, 128, %s36, [#allocation6]
    $region9: #{tpu_custom_call.1} parent=1 // pred_fallthru
      _
    // Predicated region
    $region10: #{tpu_custom_call.1} parent=1 // pred_check
      _
    $region11: #{tpu_custom_call.1} parent=1 // pred_check_branch
      %40 = sbr.rel (0) target = $region13
    $region12: #{tpu_custom_call.1} parent=1 // pred_region
      %41 = dma.done [#allocation3], 512
    $region13: #{tpu_custom_call.1} parent=1 // pred_fallthru
      _
    // Predicated region
    $region14: #{tpu_custom_call.1} parent=1 // pred_check
      _
    $region15: #{tpu_custom_call.1} parent=1 // pred_check_branch
      %43 = sbr.rel (0) target = $region17
    $region16: #{tpu_custom_call.1} parent=1 // pred_region
      %44 = dma.done [#allocation6], 128
    $region17: #{tpu_custom_call.1} parent=1 // pred_fallthru
      _
    %s45 = sadd.s32 0, 0
    %s46 = smul.u32 4, %s45
    %s47 = sadd.s32 0, 0
    %p48 = scmp.eq.s32.totalorder 0, 0
    // Predicated region
    $region18: #{tpu_custom_call.1} parent=1 // pred_check
      %p49 = pneg %p48
    $region19: #{tpu_custom_call.1} parent=1 // pred_check_branch
      %51 = sbr.rel (%p49) target = $region21
    $region20: #{tpu_custom_call.1} parent=1 // pred_region
      %52 = vst [vmem:[#allocation7] sm:$0x1] 0.0
    $region21: #{tpu_custom_call.1} parent=1 // pred_fallthru
      _
    %v53 = vld [vmem:[#allocation2] sm:$0xff]
    %v54 = vld [vmem:[#allocation2 + $0x8] sm:$0xff]
    %v55 = vld [vmem:[#allocation2 + $0x10] sm:$0xff]
    %v56 = vld [vmem:[#allocation2 + $0x18] sm:$0xff]
    %v57 = vld [vmem:[#allocation5] sm:$0xff]
    %v58 = vunpack.c.0.s8 %v57
    %v59 = vunpack.c.1.s8 %v57
    %v60 = vunpack.c.2.s8 %v57
    %v61 = vunpack.c.3.s8 %v57
    %v62 = vcvt.s32.f32 %v58
    %v63 = vcvt.s32.f32 %v59
    %v64 = vcvt.s32.f32 %v60
    %v65 = vcvt.s32.f32 %v61
    %vm66 = vcmp.gt.f32.partialorder %v62, 0.5
    %vm67 = vcmp.gt.f32.partialorder %v63, 0.5
    %vm68 = vcmp.gt.f32.partialorder %v64, 0.5
    %vm69 = vcmp.gt.f32.partialorder %v65, 0.5
    %v70 = vand.u32 2147483647, %v53
    %v71 = vand.u32 2147483647, %v54
    %v72 = vand.u32 2147483647, %v55
    %v73 = vand.u32 2147483647, %v56
    %v74 = vsub.f32 0.0, %v70
    %v75 = vsub.f32 0.0, %v71
    %v76 = vsub.f32 0.0, %v72
    %v77 = vsub.f32 0.0, %v73
    %v78 = vmul.f32 %v74, 1.442695
    %v79 = vpow.pop %v78
    %v80 = vmul.f32 %v75, 1.442695
    %v81 = vpow.pop %v80
    %v82 = vmul.f32 %v76, 1.442695
    %v83 = vpow.pop %v82
    %v84 = vmul.f32 %v77, 1.442695
    %v85 = vpow.pop %v84
    %v86 = vadd.f32 %v79, 1.0
    %v87 = vadd.f32 %v81, 1.0
    %v88 = vadd.f32 %v83, 1.0
    %v89 = vadd.f32 %v85, 1.0
    %v90 = vrcp.pop %v86
    %v91 = vmul.f32 1.0, %v90
    %v92 = vrcp.pop %v87
    %v93 = vmul.f32 1.0, %v92
    %v94 = vrcp.pop %v88
    %v95 = vmul.f32 1.0, %v94
    %v96 = vrcp.pop %v89
    %v97 = vmul.f32 1.0, %v96
    %vm98 = vcmp.ge.f32.partialorder %v53, 0.0
    %vm99 = vcmp.ge.f32.partialorder %v54, 0.0
    %vm100 = vcmp.ge.f32.partialorder %v55, 0.0
    %vm101 = vcmp.ge.f32.partialorder %v56, 0.0
    %v102 = vsub.f32 1.0, %v91
    %v103 = vsub.f32 1.0, %v93
    %v104 = vsub.f32 1.0, %v95
    %v105 = vsub.f32 1.0, %v97
    %v106 = vsel %vm98, %v91, %v102
    %v107 = vsel %vm99, %v93, %v103
    %v108 = vsel %vm100, %v95, %v104
    %v109 = vsel %vm101, %v97, %v105
    %v110 = vsub.f32 1.0, %v106
    %v111 = vsub.f32 1.0, %v107
    %v112 = vsub.f32 1.0, %v108
    %v113 = vsub.f32 1.0, %v109
    %v114 = vsel %vm66, %v110, %v106
    %v115 = vsel %vm67, %v111, %v107
    %v116 = vsel %vm68, %v112, %v108
    %v117 = vsel %vm69, %v113, %v109
    %v118 = vmul.f32 %v114, %v114
    %v119 = vmul.f32 %v115, %v115
    %v120 = vmul.f32 %v116, %v116
    %v121 = vmul.f32 %v117, %v117
    %v122 = vsel %vm66, 0.25, 0.75
    %v123 = vsel %vm67, 0.25, 0.75
    %v124 = vsel %vm68, 0.25, 0.75
    %v125 = vsel %vm69, 0.25, 0.75
    %v126 = vmul.f32 %v122, %v118
    %v127 = vmul.f32 %v123, %v119
    %v128 = vmul.f32 %v124, %v120
    %v129 = vmul.f32 %v125, %v121
    %v130 = vmax.f32 %v53, 0.0
    %v131 = vmax.f32 %v54, 0.0
    %v132 = vmax.f32 %v55, 0.0
    %v133 = vmax.f32 %v56, 0.0
    %v134 = vsel %vm66, %v53, 0.0
    %v135 = vsel %vm67, %v54, 0.0
    %v136 = vsel %vm68, %v55, 0.0
    %v137 = vsel %vm69, %v56, 0.0
    %v138 = vsub.f32 %v130, %v134
    %v139 = vsub.f32 %v131, %v135
    %v140 = vsub.f32 %v132, %v136
    %v141 = vsub.f32 %v133, %v137
    %v142 = vadd.f32 %v79, 1.0
    %v143 = vlog2.pop %v142
    %v144 = vmul.f32 %v143, 0.6931472
    %v145 = vmul.f32 -0.5, %v79
    %v146 = vadd.f32 %v145, 1.0
    %v147 = vmul.f32 %v146, %v79
    %v148 = vand.u32 2147483647, %v79
    %vm149 = vcmp.lt.f32.partialorder %v148, 0.0004427343
    %v150 = vsel %vm149, %v147, %v144
    %v151 = vadd.f32 %v81, 1.0
    %v152 = vlog2.pop %v151
    %v153 = vmul.f32 %v152, 0.6931472
    %v154 = vmul.f32 -0.5, %v81
    %v155 = vadd.f32 %v154, 1.0
    %v156 = vmul.f32 %v155, %v81
    %v157 = vand.u32 2147483647, %v81
    %vm158 = vcmp.lt.f32.partialorder %v157, 0.0004427343
    %v159 = vsel %vm158, %v156, %v153
    %v160 = vadd.f32 %v83, 1.0
    %v161 = vlog2.pop %v160
    %v162 = vmul.f32 %v161, 0.6931472
    %v163 = vmul.f32 -0.5, %v83
    %v164 = vadd.f32 %v163, 1.0
    %v165 = vmul.f32 %v164, %v83
    %v166 = vand.u32 2147483647, %v83
    %vm167 = vcmp.lt.f32.partialorder %v166, 0.0004427343
    %v168 = vsel %vm167, %v165, %v162
    %v169 = vadd.f32 %v85, 1.0
    %v170 = vlog2.pop %v169
    %v171 = vmul.f32 %v170, 0.6931472
    %v172 = vmul.f32 -0.5, %v85
    %v173 = vadd.f32 %v172, 1.0
    %v174 = vmul.f32 %v173, %v85
    %v175 = vand.u32 2147483647, %v85
    %vm176 = vcmp.lt.f32.partialorder %v175, 0.0004427343
    %v177 = vsel %vm176, %v174, %v171
    %v178 = vadd.f32 %v138, %v150
    %v179 = vadd.f32 %v139, %v159
    %v180 = vadd.f32 %v140, %v168
    %v181 = vadd.f32 %v141, %v177
    %vm182 = vcmp.ge.f32.partialorder %v106, 0.7
    %vm183 = vcmp.ge.f32.partialorder %v107, 0.7
    %vm184 = vcmp.ge.f32.partialorder %v108, 0.7
    %vm185 = vcmp.ge.f32.partialorder %v109, 0.7
    %vm186 = vmor %vm182, %vm66
    %vm187 = vmor %vm183, %vm67
    %vm188 = vmor %vm184, %vm68
    %vm189 = vmor %vm185, %vm69
    %v190 = vmul.f32 %v178, %v126
    %v191 = vmul.f32 %v179, %v127
    %v192 = vmul.f32 %v180, %v128
    %v193 = vmul.f32 %v181, %v129
    %v194 = vsel %vm186, %v190, 0.0
    %v195 = vsel %vm187, %v191, 0.0
    %v196 = vsel %vm188, %v192, 0.0
    %v197 = vsel %vm189, %v193, 0.0
    %v198 = vld [vmem:[#allocation7] sm:$0x1]
    %v199 = vadd.f32 %v194, %v195
    %v200 = vadd.f32 %v199, %v196
    %v201 = vadd.f32 %v200, %v197
    %v202 = vrot.slane %v201, 4
    %v203 = vadd.f32 %v201, %v202
    %v204 = vrot.slane %v203, 2
    %v205 = vadd.f32 %v203, %v204
    %v206 = vrot.slane %v205, 1
    %v207 = vadd.f32 %v205, %v206
    %v208 = vadd.f32 %v198, %v207
    %209 = vst [vmem:[#allocation7] sm:$0x1] %v208
    // Predicated region
    $region22: #{tpu_custom_call.1} parent=1 // pred_check
      _
    $region23: #{tpu_custom_call.1} parent=1 // pred_check_branch
      %211 = sbr.rel (0) target = $region25
    $region24: #{tpu_custom_call.1} parent=1 // pred_region
      %s213 = ssub.s32 16, 16
      %214 = vsyncadd [#allocation4], %s213
      %s216 = sshll.u32 [#allocation7], 4
      %s217 = int_to_ptr.vmem [resolvable:$true] %s216
      %219 = dma.vmem_to_hbm [thread:$0]  %s217, 16, %s2, [#allocation4]
    $region25: #{tpu_custom_call.1} parent=1 // pred_fallthru
      _
    // Predicated region
    $region26: #{tpu_custom_call.1} parent=1 // pred_check
      _
    $region27: #{tpu_custom_call.1} parent=1 // pred_check_branch
      %221 = sbr.rel (0) target = $region29
    $region28: #{tpu_custom_call.1} parent=1 // pred_region
      %222 = dma.done [#allocation4], 16
    $region29: #{tpu_custom_call.1} parent=1 // pred_fallthru
      _
    %223 = vsyncpa [#allocation3], 1
    %224 = vsyncpa [#allocation6], 1
    %225 = vsyncpa [#allocation4], 1

</llo_original>
